<compile_context>
chip_gen: v5e
topology: v5e:2x2
jax: 0.10.0
libtpu: 0.0.40
codegen_flags: <defaults>
</compile_context>

<pallas_src>
import jax
import jax.numpy as jnp
from jax.experimental import pallas as pl
from jax.experimental.pallas import tpu as pltpu


_LANE = 128
_SUBLANE = 8


# ----------------------------- kernels ---------------------------------------
def _drop_path_kernel(x_ref, s_ref, o_ref):
    # out[n, f] = x[n, f] * scale[n]         (f32 accumulate, x.dtype store)
    x = x_ref[...].astype(jnp.float32)
    o_ref[...] = (x * s_ref[...]).astype(o_ref.dtype)


def _drop_path_add_kernel(x_ref, r_ref, s_ref, o_ref):
    # Fused residual: out[n, f] = residual[n, f] + x[n, f] * scale[n]
    x = x_ref[...].astype(jnp.float32)
    r = r_ref[...].astype(jnp.float32)
    o_ref[...] = (r + x * s_ref[...]).astype(o_ref.dtype)


# --------------------------- tiling helpers -----------------------------------
def _round_up(x, m):
    return ((x + m - 1) // m) * m


def _tpu_tile_params():
    """(target_block_bytes, vmem_cap_bytes), generation-aware with safe fallback."""
    vmem_bytes = 64 << 20                       # conservative default (v7x-sized VMEM)
    try:
        info = pltpu.get_tpu_info()
        vmem_bytes = int(getattr(info, "vmem_capacity_bytes", vmem_bytes))
    except Exception:
        pass
    if vmem_bytes >= (96 << 20):
        # v5e / v6e (128 MiB VMEM): 8 MiB tiles amortize the ~0.35 us/step grid
        # overhead with plenty of double-buffer headroom.
        return 8 << 20, 64 << 20
    # v7x (64 MiB VMEM, 3.2 TB/s HBM): big tiles matter most, but keep the
    # double-buffered footprint + headroom under ~48 MiB.
    return 8 << 20, 48 << 20


def _choose_blocks(n_rows, n_cols, itemsize, target_bytes):
    """Pick a big, lane-dense, balanced (block_n, block_f) tile.

    Each block dim is either a multiple of the hardware tile (8*packing
    sublanes, 128 lanes) or the full array dim.  Blocks target ~target_bytes
    so the DMA pipeline runs near the HBM roofline, are capped so large
    tensors get a >=8-step grid (dual-TensorCore occupancy on v7x), and the
    feature axis is split into near-equal 128-multiples (no heavy ragged tail).
    """
    sub = _SUBLANE * max(1, 4 // itemsize)      # 8 (f32) / 16 (bf16) / 32 (int8)
    min_elems = sub * _LANE
    total = n_rows * n_cols

    target_elems = min(target_bytes // itemsize, max(min_elems, total // 8))
    target_elems = max(target_elems, min_elems)

    # Row (sublane) axis: one packing quantum, or the full dim if small.
    block_n = n_rows if n_rows <= sub else sub

    # Feature (lane) axis carries the volume.
    budget_f = max(_LANE, (target_elems // block_n) // _LANE * _LANE)
    if n_cols <= budget_f:
        block_f = n_cols
        # Short feature axis: grow the row axis in near-equal multiples of
        # `sub` instead of leaving tiny blocks.
        rows_budget = max(sub, (target_elems // max(n_cols, 1)) // sub * sub)
        if rows_budget >= n_rows:
            block_n = n_rows
        else:
            n_row_blocks = pl.cdiv(n_rows, rows_budget)
            block_n = min(n_rows, _round_up(pl.cdiv(n_rows, n_row_blocks), sub))
    else:
        # Balance feature blocks so one grid step / one TensorCore does not
        # carry a ~2x heavier tail block.
        n_f_blocks = pl.cdiv(n_cols, budget_f)
        block_f = min(n_cols, _round_up(pl.cdiv(n_cols, n_f_blocks), _LANE))
    return block_n, block_f


def _row_scale_call(kernel, operands, scale_col, out_dtype):
    """Stream one or more [N, F] operands + a per-row f32 scale through `kernel`."""
    n_rows, n_cols = operands[0].shape
    itemsize = max([jnp.dtype(o.dtype).itemsize for o in operands]
                   + [jnp.dtype(out_dtype).itemsize])
    n_big = len(operands) + 1                   # big inputs + the output slab

    target_bytes, vmem_cap = _tpu_tile_params()
    # Leave room for the double-buffered footprint of every big operand.
    target_bytes = min(target_bytes, max(1 << 20, (vmem_cap - (8 << 20)) // (2 * n_big)))
    block_n, block_f = _choose_blocks(n_rows, n_cols, itemsize, target_bytes)

    grid_n = pl.cdiv(n_rows, block_n)
    grid_f = pl.cdiv(n_cols, block_f)
    # Put the longer axis first so megacore sharding sees it as the leading
    # "parallel" dimension.
    if grid_n >= grid_f:
        grid = (grid_n, grid_f)
        big_map = lambda i, j: (i, j)
        s_map = lambda i, j: (i, 0)
    else:
        grid = (grid_f, grid_n)
        big_map = lambda j, i: (i, j)
        s_map = lambda j, i: (i, 0)

    block_bytes = block_n * block_f * itemsize
    vmem_limit = int(min(vmem_cap, max(16 << 20, 2 * n_big * block_bytes + (4 << 20))))

    big_bytes = sum(o.size * jnp.dtype(o.dtype).itemsize for o in operands)
    cost = pl.CostEstimate(
        flops=len(operands) * n_rows * n_cols,
        transcendentals=0,
        bytes_accessed=big_bytes
        + n_rows * n_cols * jnp.dtype(out_dtype).itemsize
        + scale_col.size * 4,
    )

    big_spec = pl.BlockSpec((block_n, block_f), big_map)
    # TODO(synk): input_output_aliases={0: 0} would avoid the second N*F HBM
    # allocation, but without caller-side buffer donation XLA re-inserts a copy
    # (an extra full HBM pass), so it is intentionally not set here.
    return pl.pallas_call(
        kernel,
        out_shape=jax.ShapeDtypeStruct((n_rows, n_cols), out_dtype),
        grid=grid,
        in_specs=[big_spec] * len(operands) + [pl.BlockSpec((block_n, 1), s_map)],
        out_specs=big_spec,
        compiler_params=pltpu.CompilerParams(
            dimension_semantics=("parallel", "parallel"),
            vmem_limit_bytes=vmem_limit,
        ),
        cost_estimate=cost,
    )(*operands, scale_col)


# ------------------------------ wrappers --------------------------------------
def _sample_scale(key, n, keep_prob, scale_by_keep):
    mask = jax.random.bernoulli(key, keep_prob, (n,)).astype(jnp.float32)
    if keep_prob > 0.0 and scale_by_keep:
        mask = mask / keep_prob
    return mask.reshape(n, 1)


def drop_path(x, drop_prob: float = 0.0, training: bool = False,
              scale_by_keep: bool = True, *, key=None):
    """Per-sample path dropping (stochastic depth) — forward of the torch module."""
    if drop_prob is None:
        drop_prob = 0.0
    if drop_prob == 0.0 or not training:
        return x
    if key is None:
        raise ValueError(
            "drop_path: an explicit PRNG `key` is required in training mode "
            "(torch draws fresh randomness every call; a silent fixed key would "
            "reuse the same drop mask on every step).")
    keep_prob = 1.0 - drop_prob
    n = x.shape[0]
    scale = _sample_scale(key, n, keep_prob, scale_by_keep)
    x2d = x.reshape(n, -1)                      # free row-major reshape, no transpose
    y2d = _row_scale_call(_drop_path_kernel, (x2d,), scale, x.dtype)
    return y2d.reshape(x.shape)


def drop_path_add(x, residual, drop_prob: float = 0.0, training: bool = False,
                  scale_by_keep: bool = True, *, key=None):
    """Fused `residual + drop_path(x)` — removes the extra N*F HBM round trip
    that a standalone DropPath followed by a residual add would pay."""
    if drop_prob is None:
        drop_prob = 0.0
    assert x.shape == residual.shape and x.dtype == residual.dtype
    if drop_prob == 0.0 or not training:
        return residual + x
    if key is None:
        raise ValueError("drop_path_add: an explicit PRNG `key` is required in training mode.")
    keep_prob = 1.0 - drop_prob
    n = x.shape[0]
    scale = _sample_scale(key, n, keep_prob, scale_by_keep)
    x2d = x.reshape(n, -1)
    r2d = residual.reshape(n, -1)
    y2d = _row_scale_call(_drop_path_add_kernel, (x2d, r2d), scale, x.dtype)
    return y2d.reshape(x.shape)


class DropPath:
    """Pallas port of the PyTorch DropPath module (per-sample stochastic depth)."""

    def __init__(self, drop_prob=None, scale_by_keep=True):
        self.drop_prob = drop_prob
        self.scale_by_keep = scale_by_keep
        self.training = True                    # torch nn.Module default mode

    def train(self, mode=True):
        self.training = mode
        return self

    def eval(self):
        self.training = False
        return self

    def __call__(self, x, *, key=None, residual=None):
        if residual is not None:
            return drop_path_add(x, residual, self.drop_prob, self.training,
                                 self.scale_by_keep, key=key)
        return drop_path(x, self.drop_prob, self.training, self.scale_by_keep, key=key)


# -------------------- pure-JAX references for verification --------------------
def _ref_drop_path(x, drop_prob, scale_by_keep, key):
    keep_prob = 1.0 - drop_prob
    n = x.shape[0]
    mask = jax.random.bernoulli(key, keep_prob, (n,)).astype(jnp.float32)
    if keep_prob > 0.0 and scale_by_keep:
        mask = mask / keep_prob
    bshape = (n,) + (1,) * (x.ndim - 1)
    return (x.astype(jnp.float32) * mask.reshape(bshape)).astype(x.dtype)


def _ref_drop_path_add(x, r, drop_prob, scale_by_keep, key):
    keep_prob = 1.0 - drop_prob
    n = x.shape[0]
    mask = jax.random.bernoulli(key, keep_prob, (n,)).astype(jnp.float32)
    if keep_prob > 0.0 and scale_by_keep:
        mask = mask / keep_prob
    bshape = (n,) + (1,) * (x.ndim - 1)
    return (r.astype(jnp.float32)
            + x.astype(jnp.float32) * mask.reshape(bshape)).astype(x.dtype)


if __name__ == "__main__":
    root = jax.random.PRNGKey(0)
    kx1, kx2, kx3, kr, km1, km2, km3, km4 = jax.random.split(root, 8)

    # A: module-sized input (batch=2, channels=4, spatial=16x16), training mode.
    x_a = jax.random.normal(kx1, (2, 4, 16, 16), jnp.float32)
    dp = DropPath(drop_prob=0.25, scale_by_keep=True)       # training by default
    y_a = jax.block_until_ready(dp(x_a, key=km1))
    ref_a = _ref_drop_path(x_a, 0.25, True, km1)
    assert y_a.shape == x_a.shape and y_a.dtype == x_a.dtype
    assert jnp.allclose(y_a, ref_a, atol=1e-6, rtol=1e-6), "test A mismatch"

    # B: larger batch -> multi-step grid with a ragged last row-block.
    x_b = jax.random.normal(kx2, (600, 4, 16, 16), jnp.float32)
    y_b = jax.block_until_ready(drop_path(x_b, 0.5, True, True, key=km2))
    ref_b = _ref_drop_path(x_b, 0.5, True, km2)
    assert jnp.allclose(y_b, ref_b, atol=1e-6, rtol=1e-6), "test B mismatch"

    # C: bf16, 3-D input, no keep_prob rescaling.
    x_c = jax.random.normal(kx3, (4, 8, 32), jnp.float32).astype(jnp.bfloat16)
    y_c = jax.block_until_ready(drop_path(x_c, 0.2, True, False, key=km3))
    ref_c = _ref_drop_path(x_c, 0.2, False, km3)
    assert y_c.dtype == jnp.bfloat16
    assert jnp.allclose(y_c.astype(jnp.float32), ref_c.astype(jnp.float32),
                        atol=1e-6, rtol=1e-6), "test C mismatch"

    # D: eval mode and drop_prob == 0 are exact identities (no kernel launched).
    assert DropPath(0.25).eval()(x_a) is x_a
    assert drop_path(x_a, 0.0, True, True) is x_a

    # E: fused residual variant  out = residual + drop_path(x).
    r_e = jax.random.normal(kr, (2, 4, 16, 16), jnp.float32)
    y_e = jax.block_until_ready(
        DropPath(0.25)(x_a, key=km4, residual=r_e))
    ref_e = _ref_drop_path_add(x_a, r_e, 0.25, True, km4)
    assert jnp.allclose(y_e, ref_e, atol=1e-6, rtol=1e-6), "test E mismatch"

    # F: missing key in training mode must raise (no silent fixed-key fallback).
    try:
        drop_path(x_a, 0.25, True, True)
        raise AssertionError("expected ValueError for missing key")
    except ValueError:
        pass

    print("KERNEL_OK")
</pallas_src>

<mosaic_0001>
module attributes {stable_mosaic.version = 11 : i64} {
  func.func @_drop_path_kernel(%arg0: i32, %arg1: i32, %arg2: memref<2x512xf32, #tpu.memory_space<vmem>>, %arg3: memref<2x1xf32, #tpu.memory_space<vmem>>, %arg4: memref<2x512xf32, #tpu.memory_space<vmem>>) attributes {dimension_semantics = [#tpu.dimension_semantics<parallel>, #tpu.dimension_semantics<parallel>], iteration_bounds = array<i64: 2, 1>, scalar_prefetch = 0 : i64, scratch_operands = 0 : i64, tpu.core_type = #tpu.core_type<tc>, window_params = [{transform_indices = @transform_0, window_bounds = array<i64: 2, 512>}, {transform_indices = @transform_1, window_bounds = array<i64: 2, 1>}, {transform_indices = @transform_2, window_bounds = array<i64: 2, 512>}]} {
    %c0 = arith.constant 0 : index
    %c0_0 = arith.constant 0 : index
    %0 = vector.load %arg2[%c0, %c0_0] : memref<2x512xf32, #tpu.memory_space<vmem>>, vector<2x512xf32>
    %c0_1 = arith.constant 0 : index
    %c0_2 = arith.constant 0 : index
    %1 = vector.load %arg3[%c0_1, %c0_2] : memref<2x1xf32, #tpu.memory_space<vmem>>, vector<2x1xf32>
    %2 = vector.broadcast %1 : vector<2x1xf32> to vector<2x512xf32>
    %3 = arith.mulf %0, %2 : vector<2x512xf32>
    %c0_3 = arith.constant 0 : index
    %c0_4 = arith.constant 0 : index
    %4 = vector.load %arg4[%c0_3, %c0_4] : memref<2x512xf32, #tpu.memory_space<vmem>>, vector<2x512xf32>
    tpu.vector_store %arg4[%c0_3, %c0_4], %3 {strides = array<i32>} : memref<2x512xf32, #tpu.memory_space<vmem>>, vector<2x512xf32>,
    return
  }
  func.func @transform_0(%arg0: i32, %arg1: i32) -> (i32, i32) {
    %c0_i32 = arith.constant 0 : i32
    return %arg1, %arg0 : i32, i32
  }
  func.func @transform_1(%arg0: i32, %arg1: i32) -> (i32, i32) {
    %c0_i32 = arith.constant 0 : i32
    %c0_i32_0 = arith.constant 0 : i32
    return %arg1, %c0_i32 : i32, i32
  }
  func.func @transform_2(%arg0: i32, %arg1: i32) -> (i32, i32) {
    %c0_i32 = arith.constant 0 : i32
    return %arg1, %arg0 : i32, i32
  }
}

</mosaic_0001>

<llo_original>
// kernel: tpu_custom_call.1
$region0: #{tpu_custom_call.1}
  #allocation0 [shape = 'u32[]', space=smem, size = 0x4, offset = 0x4, fixed_abs, tag = 'smem constant byte address 0x4 - core index']
  #allocation1 [shape = 'u32[72,128]{1,0:T(1,128)}', space=vmem, size = 0x9000, scoped, tag = 'internal scratch']
  %s0 = inlined_call_operand.hbm [shape: f32[2,1024], index: 0, kind: input, shape index: {}]
  %s1 = inlined_call_operand.vmem [shape: f32[2,1], index: 1, kind: input, shape index: {}]
  %s2 = inlined_call_operand.hbm [shape: f32[2,1024], index: 2, kind: output, shape index: {}]
  %s3 = sld [smem:[#allocation0]]
  $region45: #{tpu_custom_call.1} parent=0
    _
  %s5 = ssub.s32 1, %s3
  %s6 = scalar_select 0, %s5, %s3
  $region1: #{tpu_custom_call.1} parent=0
    #allocation2 [shape = 'u8[8192]{0}', space=vmem, size = 0x2000, scoped, tag = 'input window, operand 0']
    #allocation3 [shape = 's32[2]{0}', space=sflag, size = 0x8, scoped, tag = 'scoped memory for tpu_custom_call.1']
    #allocation4 [shape = 's32[2]{0}', space=sflag, size = 0x8, scoped, tag = 'scoped memory for tpu_custom_call.1']
    #allocation5 [shape = 'u8[8192]{0}', space=vmem, size = 0x2000, scoped, tag = 'output window, operand 0']
    %7 = vsyncpa [#allocation3], 0
    %s8 = scalar_lea.sflag [#allocation3], 1
    %9 = vsyncpa %s8, 0
    %10 = vsyncpa [#allocation4], 0
    %s11 = scalar_lea.sflag [#allocation4], 1
    %12 = vsyncpa %s11, 0
    loop: start=0, step=1, limit=4
    $region2: #{tpu_custom_call.1} parent=1 // loop_pre_header
      _
    $region3: #{tpu_custom_call.1} parent=1 // loop_header
      %s14 = sphi 0, %s18
      %p15 = scmp.ge.s32.totalorder %s14, 4
      %s21 = sphi 0, %s33
      %s22 = sphi 0, %s29
      %s23 = sphi 0, %s21
      %s24 = sphi 0, %s22
      %s25 = sphi 0, %s23
      %s26 = sphi 0, %s24
      %s38 = sphi 0, %s40
      %s41 = sphi 0, %s38
      %s42 = sphi 0, %s41
      %s58 = sphi 0, %s42
      %s64 = sphi 0, %s66
      %s67 = sphi 0, %s64
      %s68 = sphi 0, %s67
      %s84 = sphi 0, %s68
      %s92 = sphi 0, %s94
      %s95 = sphi 0, %s92
      %s96 = sphi 0, %s95
      %s112 = sphi 0, %s96
    $region4: #{tpu_custom_call.1} parent=1 // loop_header_branch
      %17 = sbr.rel (%p15) target = $region8
    $region5: #{tpu_custom_call.1} parent=1 // loop_body
      %s19 = ssub.s32 %s14, 1
      %s20 = ssub.s32 %s14, 2
      %s27 = sadd.s32 1, %s22
      %p28 = scmp.ge.s32.totalorder %s27, 1
      %s29 = scalar_select %p28, 0, %s27
      %s30 = sadd.s32 1, %s21
      %s31 = scalar_select %p28, %s30, %s21
      %p32 = scmp.ge.s32.totalorder %s31, 2
      %s33 = scalar_select %p32, 0, %s31
      %s34 = ssub.s32 %s22, %s29
      %s35 = ssub.s32 %s21, %s33
      %s36 = sor.u32 %s34, %s35
      %p37 = scmp.eq.s32.totalorder %s36, 0
      %s39 = sadd.s32 %s38, 1
      %s40 = scalar_select %p37, %s38, %s39
      %p43 = pneg %p37
      %p44 = scmp.eq.s32.totalorder %s14, 1
      %p45 = por %p43, %p44
      %p46 = scmp.ne.s32.totalorder %s38, %s41
      %p47 = scmp.eq.s32.totalorder %s14, 0
      %p48 = por %p46, %p47
      %p49 = scmp.ne.s32.totalorder %s38, %s41
      %p50 = scmp.eq.s32.totalorder %s19, 1
      %p51 = por %p49, %p50
      %p52 = scmp.ne.s32.totalorder %s41, %s42
      %p53 = scmp.eq.s32.totalorder %s19, 0
      %p54 = por %p52, %p53
      %p55 = scmp.ne.s32.totalorder %s41, %s42
      %p56 = scmp.eq.s32.totalorder %s20, 1
      %p57 = por %p55, %p56
      %p59 = scmp.ne.s32.totalorder %s42, %s58
      %p60 = scmp.eq.s32.totalorder %s20, 0
      %p61 = por %p59, %p60
      %s62 = ssub.s32 %s22, %s29
      %p63 = scmp.eq.s32.totalorder %s62, 0
      %s65 = sadd.s32 %s64, 1
      %s66 = scalar_select %p63, %s64, %s65
      %p69 = pneg %p63
      %p70 = scmp.eq.s32.totalorder %s14, 1
      %p71 = por %p69, %p70
      %p72 = scmp.ne.s32.totalorder %s64, %s67
      %p73 = scmp.eq.s32.totalorder %s14, 0
      %p74 = por %p72, %p73
      %p75 = scmp.ne.s32.totalorder %s64, %s67
      %p76 = scmp.eq.s32.totalorder %s19, 1
      %p77 = por %p75, %p76
      %p78 = scmp.ne.s32.totalorder %s67, %s68
      %p79 = scmp.eq.s32.totalorder %s19, 0
      %p80 = por %p78, %p79
      %p81 = scmp.ne.s32.totalorder %s67, %s68
      %p82 = scmp.eq.s32.totalorder %s20, 1
      %p83 = por %p81, %p82
      %p85 = scmp.ne.s32.totalorder %s68, %s84
      %p86 = scmp.eq.s32.totalorder %s20, 0
      %p87 = por %p85, %p86
      %s88 = ssub.s32 %s22, %s29
      %s89 = ssub.s32 %s21, %s33
      %s90 = sor.u32 %s88, %s89
      %p91 = scmp.eq.s32.totalorder %s90, 0
      %s93 = sadd.s32 %s92, 1
      %s94 = scalar_select %p91, %s92, %s93
      %p97 = pneg %p91
      %p98 = scmp.eq.s32.totalorder %s14, 1
      %p99 = por %p97, %p98
      %p100 = scmp.ne.s32.totalorder %s92, %s95
      %p101 = scmp.eq.s32.totalorder %s14, 0
      %p102 = por %p100, %p101
      %p103 = scmp.ne.s32.totalorder %s92, %s95
      %p104 = scmp.eq.s32.totalorder %s19, 1
      %p105 = por %p103, %p104
      %p106 = scmp.ne.s32.totalorder %s95, %s96
      %p107 = scmp.eq.s32.totalorder %s19, 0
      %p108 = por %p106, %p107
      %p109 = scmp.ne.s32.totalorder %s95, %s96
      %p110 = scmp.eq.s32.totalorder %s20, 1
      %p111 = por %p109, %p110
      %p113 = scmp.ne.s32.totalorder %s96, %s112
      %p114 = scmp.eq.s32.totalorder %s20, 0
      %p115 = por %p113, %p114
      %p116 = scmp.le.s32.totalorder 1, %s14
      %p117 = scmp.lt.s32.totalorder %s14, 3
      %p118 = pnand %p116, %p117
      %p119 = pneg %p118
      // Predicated region
      $region9: #{tpu_custom_call.1} parent=5 // pred_check
        _
      $region10: #{tpu_custom_call.1} parent=5 // pred_check_branch
        %121 = sbr.rel (%p118) target = $region12
      $region11: #{tpu_custom_call.1} parent=5 // pred_region
        %s122 = ssub.s32 %s14, 1
        // Predicated region
        $region13: #{tpu_custom_call.1} parent=11 // pred_check
          %p123 = pneg %p80
        $region14: #{tpu_custom_call.1} parent=11 // pred_check_branch
          %125 = sbr.rel (%p123) target = $region16
        $region15: #{tpu_custom_call.1} parent=11 // pred_region
          %p126 = scmp.lt.s32.totalorder %s24, 0
          %s127 = scalar_select %p126, %s24, 0
          %s128 = smul.addr %s127, 2
          %s129 = scalar_lea.vmem %s1, %s128
        $region16: #{tpu_custom_call.1} parent=11 // pred_fallthru
          _
      $region12: #{tpu_custom_call.1} parent=5 // pred_fallthru
        _
      %p130 = scmp.lt.s32.totalorder %s14, 2
      // Predicated region
      $region17: #{tpu_custom_call.1} parent=5 // pred_check
        %p131 = pneg %p130
      $region18: #{tpu_custom_call.1} parent=5 // pred_check_branch
        %133 = sbr.rel (%p131) target = $region20
      $region19: #{tpu_custom_call.1} parent=5 // pred_region
        // Predicated region
        $region21: #{tpu_custom_call.1} parent=19 // pred_check
          %p134 = pneg %p48
        $region22: #{tpu_custom_call.1} parent=19 // pred_check_branch
          %136 = sbr.rel (%p134) target = $region24
        $region23: #{tpu_custom_call.1} parent=19 // pred_region
          %s137 = sand.u32 %s38, 1
          %s138 = scalar_lea.sflag [#allocation3], %s137
          %s139 = sand.u32 %s38, 1
          %s140 = smul.addr %s139, 8
          %s141 = scalar_lea.vmem [#allocation2], %s140
          %s142 = smul.u32 4, %s21
          %144 = vsyncadd %s138, 0
          %s145 = smul.addr %s22, 8
          %s146 = sadd.s32 %s142, %s145
          %s147 = smul.addr %s146, 2
          %s148 = scalar_lea.hbm %s0, %s147
          %s150 = sshll.u32 %s148, 4
          %s151 = int_to_ptr.hbm [resolvable:$true] %s150
          %s152 = sshll.u32 %s141, 4
          %s153 = int_to_ptr.vmem [resolvable:$true] %s152
          %155 = dma.hbm_to_vmem [thread:$0]  %s151, 128, %s153, %s138
        $region24: #{tpu_custom_call.1} parent=19 // pred_fallthru
          _
      $region20: #{tpu_custom_call.1} parent=5 // pred_fallthru
        _
      %p156 = scmp.le.s32.totalorder 1, %s14
      %p157 = scmp.lt.s32.totalorder %s14, 3
      %p158 = pnand %p156, %p157
      %p159 = pneg %p158
      // Predicated region
      $region25: #{tpu_custom_call.1} parent=5 // pred_check
        _
      $region26: #{tpu_custom_call.1} parent=5 // pred_check_branch
        %161 = sbr.rel (%p158) target = $region28
      $region27: #{tpu_custom_call.1} parent=5 // pred_region
        %s162 = ssub.s32 %s14, 1
        %s163 = sand.u32 %s41, 1
        %s164 = scalar_lea.sflag [#allocation3], %s163
        %s165 = sand.u32 %s41, 1
        %s166 = smul.addr %s165, 8
        %s167 = scalar_lea.vmem [#allocation2], %s166
        // Predicated region
        $region29: #{tpu_custom_call.1} parent=27 // pred_check
          %p168 = pneg %p54
        $region30: #{tpu_custom_call.1} parent=27 // pred_check_branch
          %170 = sbr.rel (%p168) target = $region32
        $region31: #{tpu_custom_call.1} parent=27 // pred_region
          %172 = dma.done %s164, 128
        $region32: #{tpu_custom_call.1} parent=27 // pred_fallthru
          _
        %s173 = sand.u32 %s41, 1
        %s174 = scalar_lea.sflag [#allocation3], %s173
        %s175 = sand.u32 %s41, 1
        %s176 = smul.addr %s175, 8
        %s177 = scalar_lea.vmem [#allocation2], %s176
        %p178 = pneg %p54
        %p179 = pneg %p51
        %p180 = scmp.lt.s32.totalorder %s24, 0
        %s181 = scalar_select %p180, %s24, 0
        %s182 = smul.addr %s181, 2
        %s183 = scalar_lea.vmem %s1, %s182
        %p184 = pneg %p80
        %p185 = pneg %p77
        %p186 = pneg %p108
        %p187 = pneg %p105
        %s188 = sand.u32 %s95, 1
        %s189 = scalar_lea.sflag [#allocation4], %s188
        %s190 = sand.u32 %s95, 1
        %s191 = smul.addr %s190, 8
        %s192 = scalar_lea.vmem [#allocation5], %s191
        %s193 = smul.u32 4, %s23
        %p194 = scmp.lt.s32.totalorder %s24, 0
        %s195 = scalar_select %p194, %s24, 0
        %s196 = smul.addr %s195, 2
        %s197 = scalar_lea.vmem %s1, %s196
        %s198 = smul.u32 4, %s23
        %v199 = vld [vmem:[%s167] sm:$0xff]
        %v200 = vld [vmem:[%s197] sm:$0x3]
        %202 = vset.pattern.permute.xlu0 0
        %203 = vperm.xlu0 %202, %v200
        %v204 = vpop.permute.xlu0 %203
        %v206 = vunpack.c.l.s4 269488144
        %v207 = vunpack.c.0.s8 %v206
        %v208 = vperm.slane %v204, %v207
        %v210 = vmul.f32 %v199, %v208
        %211 = vst [vmem:[%s192] sm:$0xff] %v210
        %s212 = sand.u32 %s95, 1
        %s213 = scalar_lea.sflag [#allocation4], %s212
        %s214 = sand.u32 %s95, 1
        %s215 = smul.addr %s214, 8
        %s216 = scalar_lea.vmem [#allocation5], %s215
        // Predicated region
        $region33: #{tpu_custom_call.1} parent=27 // pred_check
          %p217 = pneg %p105
        $region34: #{tpu_custom_call.1} parent=27 // pred_check_branch
          %219 = sbr.rel (%p217) target = $region36
        $region35: #{tpu_custom_call.1} parent=27 // pred_region
          %s220 = smul.u32 4, %s23
          %222 = vsyncadd %s213, 0
          %s223 = smul.addr %s24, 8
          %s224 = sadd.s32 %s220, %s223
          %s225 = smul.addr %s224, 2
          %s226 = scalar_lea.hbm %s2, %s225
          %s228 = sshll.u32 %s216, 4
          %s229 = int_to_ptr.vmem [resolvable:$true] %s228
          %s230 = sshll.u32 %s226, 4
          %s231 = int_to_ptr.hbm [resolvable:$true] %s230
          %233 = dma.vmem_to_hbm [thread:$0]  %s229, 128, %s231, %s213
        $region36: #{tpu_custom_call.1} parent=27 // pred_fallthru
          _
      $region28: #{tpu_custom_call.1} parent=5 // pred_fallthru
        _
      %p234 = scmp.le.s32.totalorder 2, %s14
      // Predicated region
      $region37: #{tpu_custom_call.1} parent=5 // pred_check
        %p235 = pneg %p234
      $region38: #{tpu_custom_call.1} parent=5 // pred_check_branch
        %237 = sbr.rel (%p235) target = $region40
      $region39: #{tpu_custom_call.1} parent=5 // pred_region
        %s238 = ssub.s32 %s14, 2
        // Predicated region
        $region41: #{tpu_custom_call.1} parent=39 // pred_check
          %p239 = pneg %p111
        $region42: #{tpu_custom_call.1} parent=39 // pred_check_branch
          %241 = sbr.rel (%p239) target = $region44
        $region43: #{tpu_custom_call.1} parent=39 // pred_region
          %s242 = sand.u32 %s96, 1
          %s243 = scalar_lea.sflag [#allocation4], %s242
          %s244 = sand.u32 %s96, 1
          %s245 = smul.addr %s244, 8
          %s246 = scalar_lea.vmem [#allocation5], %s245
          %248 = dma.done %s243, 128
        $region44: #{tpu_custom_call.1} parent=39 // pred_fallthru
          _
      $region40: #{tpu_custom_call.1} parent=5 // pred_fallthru
        _
    $region6: #{tpu_custom_call.1} parent=1 // loop_footer
      %s18 = sadd.s32 1, %s14
    $region7: #{tpu_custom_call.1} parent=1 // loop_footer_branch
      %13 = sbr.rel target = $region3
    $region8: #{tpu_custom_call.1} parent=1 // loop_exit
      _
    %249 = vsyncpa [#allocation3], 1
    %s250 = scalar_lea.sflag [#allocation3], 1
    %251 = vsyncpa %s250, 1
    %252 = vsyncpa [#allocation4], 1
    %s253 = scalar_lea.sflag [#allocation4], 1
    %254 = vsyncpa %s253, 1

</llo_original>
